<compile_context>
chip_gen: v5e
topology: v5e:2x2
jax: 0.10.0
libtpu: 0.0.40
codegen_flags: <defaults>
</compile_context>

<pallas_src>
import jax
import jax.numpy as jnp
from jax import lax
from jax.experimental import pallas as pl
from jax.experimental.pallas import tpu as pltpu


def _make_encoding_kernel(n_valid, tile_n, need_mask, precision):
    """Build the per-(batch, split, pixel-tile) kernel.  All args are static Python values."""

    def kernel(x_ref, cw_ref, cwm2s_ref, scale_ref, bias_ref, out_ref, acc_wx, acc_ws):
        # x_ref:      (1, C, tn)    current pixel tile, N on the lane axis (native dtype)
        # cw_ref:     (K, C) f32    codewords (used only in the finalize step)
        # cwm2s_ref:  (K, C)        -2 * scale * codewords   (x dtype, MXU operand)
        # scale_ref:  (K, 1) f32    per-code smoothing factor
        # bias_ref:   (K, 1) f32    scale * ||codeword||^2
        # out_ref:    (1, 1, K, C)  per-(batch, split) partial encoding (written at last tile)
        # acc_wx:     (K, C) f32    accumulator for sum_i w[k,i] * x[c,i]
        # acc_ws:     (K, 1) f32    accumulator for sum_i w[k,i]
        s_idx = pl.program_id(1)            # N-split index (megacore coverage for tiny B)
        t_idx = pl.program_id(2)            # pixel-tile index inside the split (reduction axis)
        n_inner = pl.num_programs(2)

        @pl.when(t_idx == 0)
        def _init():
            acc_wx[...] = jnp.zeros_like(acc_wx)
            acc_ws[...] = jnp.zeros_like(acc_ws)

        x = x_ref[0]                                             # (C, tn)
        if need_mask:
            # Ragged last tile (no HBM pad): zero the out-of-range columns BEFORE any
            # arithmetic so garbage/NaN lanes cannot leak into norms or matmuls.
            col = lax.broadcasted_iota(jnp.int32, (1, x.shape[-1]), 1)
            col = col + (s_idx * n_inner + t_idx) * tile_n
            valid = col < n_valid                                # (1, tn)
            x = jnp.where(valid, x, 0)

        # ||x_i||^2 on the MXU (K is tiny -> MXU has huge slack); frees VALU/vld slots.
        ones_row = jnp.ones((1, x.shape[0]), dtype=x.dtype)
        x_sq = lax.dot_general(ones_row, x * x, (((1,), (0,)), ((), ())),
                               preferred_element_type=jnp.float32,
                               precision=precision)              # (1, tn) f32

        # scaled squared distance:
        #   s[k, i] = scale_k*||x_i||^2 + scale_k*||cw_k||^2 - 2*scale_k*(x_i . cw_k)
        xc = lax.dot_general(cwm2s_ref[...], x, (((1,), (0,)), ((), ())),
                             preferred_element_type=jnp.float32,
                             precision=precision)                # (K, tn) f32
        s = scale_ref[...] * x_sq + bias_ref[...] + xc           # (K, tn) f32

        # softmax over the code dimension (sublane axis).  Exact reciprocal: the previous
        # approx reciprocal injected ~1e-3 relative error into every weight.
        m = jnp.max(s, axis=0, keepdims=True)                    # (1, tn)
        e = jnp.exp(s - m)                                       # (K, tn)
        denom = jnp.sum(e, axis=0, keepdims=True)                # (1, tn)
        w = e * (1.0 / denom)                                    # (K, tn)
        if need_mask:
            w = jnp.where(valid, w, 0.0)                         # padded pixels contribute 0

        # partials:  wx[k,c] += sum_i w[k,i]*x[c,i]  (tn-contraction of both operands
        # -> transposed-operand MXU matmul; no XLU transpose of the big (C, tn) tile)
        wx = lax.dot_general(w.astype(x.dtype), x, (((1,), (1,)), ((), ())),
                             preferred_element_type=jnp.float32,
                             precision=precision)                # (K, C) f32
        acc_wx[...] += wx
        acc_ws[...] += jnp.sum(w, axis=1, keepdims=True)         # (K, 1)

        @pl.when(t_idx == n_inner - 1)
        def _finish():
            enc = acc_wx[...] - acc_ws[...] * cw_ref[...]        # (K, C) f32
            out_ref[0, 0] = enc.astype(out_ref.dtype)

    return kernel


def _pick_tile_n(N, C, itemsize, target_bytes):
    """Largest lane-aligned pixel tile whose x block is ~target_bytes (or full extent)."""
    if N * C * itemsize <= target_bytes:
        return N                                    # single full-extent tile (always legal)
    tn = (target_bytes // (C * itemsize)) // 128 * 128
    tn = max(128, int(tn))
    return min(tn, N)


def encoding_forward(x_nchw, codewords, scale, *, tile_n=None, block_bytes=4 * 1024 * 1024):
    """x_nchw: (B, C, H, W); codewords: (K, C); scale: (K,)  ->  (B, K, C).

    tile_n=None auto-sizes the pixel tile to ~block_bytes per x block (multiple of 128 lanes),
    which keeps the double-buffered stream comfortably inside VMEM on v5e/v6e/v7x while
    amortizing per-grid-step overhead.  Pass tile_n explicitly to override.
    """
    B, C, H, W = x_nchw.shape
    K = codewords.shape[0]
    N = H * W
    itemsize = jnp.dtype(x_nchw.dtype).itemsize

    # Pure view: NCHW -> (B, C, N).  No HBM transpose, no HBM pad.
    x_bcn = x_nchw.reshape(B, C, N)

    if tile_n is None:
        tn = _pick_tile_n(N, C, itemsize, block_bytes)
    else:
        tn = N if N <= tile_n else max((tile_n // 128) * 128, 128)
    n_tiles = pl.cdiv(N, tn)
    need_mask = (N % tn) != 0            # ragged last tile handled in-kernel

    # Megacore coverage for tiny batches (v7x: 2 TCs sharded over parallel grid axes).
    # Split the pixel reduction into 2 independent partial sums when B == 1.
    n_split = 2 if (B == 1 and n_tiles >= 2 and n_tiles % 2 == 0) else 1
    n_inner = n_tiles // n_split

    # Fold scale into the codewords (f32).
    scale_col = scale.astype(jnp.float32).reshape(K, 1)                    # (K, 1)
    cw32 = codewords.astype(jnp.float32)                                   # (K, C)
    cw_m2s = ((-2.0 * scale_col) * cw32).astype(x_nchw.dtype)              # (K, C) MXU operand
    bias = scale_col * jnp.sum(cw32 * cw32, axis=1, keepdims=True)         # (K, 1)

    # Full-precision f32 contractions (the kernel is HBM-bound; MXU slack is enormous at K=8).
    precision = lax.Precision.HIGHEST if jnp.dtype(x_nchw.dtype) == jnp.float32 else None
    kernel = _make_encoding_kernel(N, tn, need_mask, precision)

    # VMEM budget: double-buffered x stream + in-kernel (C,tn)/(K,tn) temporaries + headroom.
    x_block_bytes = C * tn * itemsize
    vmem_limit = int(min(48 * 2**20, max(32 * 2**20, 6 * x_block_bytes)))

    out_dtype = x_nchw.dtype if n_split == 1 else jnp.float32
    flops = 2 * B * N * (2 * K * C + C) + 8 * B * N * K
    bytes_accessed = (B * C * N * itemsize
                      + B * n_split * K * C * jnp.dtype(out_dtype).itemsize
                      + 3 * K * C * 4)

    partials = pl.pallas_call(
        kernel,
        out_shape=jax.ShapeDtypeStruct((B, n_split, K, C), out_dtype),
        grid_spec=pltpu.PrefetchScalarGridSpec(
            num_scalar_prefetch=0,
            grid=(B, n_split, n_inner),             # pixel-tile reduction axis last
            in_specs=[
                pl.BlockSpec((1, C, tn), lambda b, s, t: (b, 0, s * n_inner + t)),  # x stream
                pl.BlockSpec((K, C), lambda b, s, t: (0, 0)),   # codewords (f32, finalize)
                pl.BlockSpec((K, C), lambda b, s, t: (0, 0)),   # -2*scale*codewords
                pl.BlockSpec((K, 1), lambda b, s, t: (0, 0)),   # scale
                pl.BlockSpec((K, 1), lambda b, s, t: (0, 0)),   # scale*||cw||^2
            ],
            out_specs=pl.BlockSpec((1, 1, K, C), lambda b, s, t: (b, s, 0, 0)),
            scratch_shapes=[
                pltpu.VMEM((K, C), jnp.float32),    # acc_wx
                pltpu.VMEM((K, 1), jnp.float32),    # acc_ws
            ],
        ),
        compiler_params=pltpu.CompilerParams(
            dimension_semantics=("parallel", "parallel", "arbitrary"),
            vmem_limit_bytes=vmem_limit),
        cost_estimate=pl.CostEstimate(
            flops=int(flops),
            transcendentals=int(B * N * K),
            bytes_accessed=int(bytes_accessed)),
    )(x_bcn, cw32, cw_m2s, scale_col, bias)

    # Combine the (at most 2) tiny partial encodings; free when n_split == 1.
    return jnp.sum(partials, axis=1).astype(x_nchw.dtype)


def encoding_reference(x_nchw, codewords, scale):
    """Pure-JAX reference mirroring the PyTorch forward exactly (diff-then-square form)."""
    B, C, H, W = x_nchw.shape
    K = codewords.shape[0]
    x = jnp.transpose(x_nchw.reshape(B, C, -1), (0, 2, 1))               # (B, N, C)
    diff = x[:, :, None, :] - codewords[None, None, :, :]                # (B, N, K, C)
    scaled_l2 = scale.reshape(1, 1, K) * jnp.sum(diff * diff, axis=3)    # (B, N, K)
    w = jax.nn.softmax(scaled_l2, axis=2)                                # (B, N, K)
    enc = jnp.sum(w[..., None] * diff, axis=1)                           # (B, K, C)
    return enc


if __name__ == "__main__":
    # Small shapes consistent with the module: batch=2, channels=32, 16x16 spatial, 8 codes.
    B, C, H, W = 2, 32, 16, 16
    num_codes = 8

    key = jax.random.PRNGKey(0)
    kx, kcw, ksc, kx2 = jax.random.split(key, 4)

    x = jax.random.normal(kx, (B, C, H, W), dtype=jnp.float32)

    # Deterministic parameter init matching the PyTorch __init__ distributions.
    std = 1.0 / (num_codes * C) ** 0.5
    codewords = jax.random.uniform(kcw, (num_codes, C), dtype=jnp.float32,
                                   minval=-std, maxval=std)
    scale = jax.random.uniform(ksc, (num_codes,), dtype=jnp.float32,
                               minval=-1.0, maxval=0.0)

    ref = encoding_reference(x, codewords, scale)

    # 1) Multi-tile accumulate path: N = 256 with 128-wide tiles -> 2 pixel tiles per batch.
    out = jax.block_until_ready(encoding_forward(x, codewords, scale, tile_n=128))
    assert out.shape == (B, num_codes, C)
    assert jnp.allclose(out, ref, rtol=2e-3, atol=2e-3), "mismatch vs reference"

    # 2) Ragged path: N = 300 is not a multiple of the tile -> masked last tile, no HBM pad.
    x2 = jax.random.normal(kx2, (B, C, 15, 20), dtype=jnp.float32)
    out2 = jax.block_until_ready(encoding_forward(x2, codewords, scale, tile_n=128))
    ref2 = encoding_reference(x2, codewords, scale)
    assert jnp.allclose(out2, ref2, rtol=2e-3, atol=2e-3), "mismatch vs reference (ragged N)"

    # 3) Megacore-split path (B == 1): two parallel partial reductions over N, summed outside.
    out3 = jax.block_until_ready(encoding_forward(x[:1], codewords, scale, tile_n=128))
    ref3 = encoding_reference(x[:1], codewords, scale)
    assert jnp.allclose(out3, ref3, rtol=2e-3, atol=2e-3), "mismatch vs reference (B=1 split)"

    # 4) Default auto tile sizing (single full-extent tile per batch).
    out4 = jax.block_until_ready(encoding_forward(x, codewords, scale))
    assert jnp.allclose(out4, ref, rtol=2e-3, atol=2e-3), "mismatch vs reference (auto tile)"

    print("KERNEL_OK")
</pallas_src>

<mosaic_0001>
module attributes {stable_mosaic.version = 11 : i64} {
  func.func @kernel(%arg0: i32, %arg1: i32, %arg2: i32, %arg3: memref<1x32x128xf32, #tpu.memory_space<vmem>>, %arg4: memref<8x32xf32, #tpu.memory_space<vmem>>, %arg5: memref<8x32xf32, #tpu.memory_space<vmem>>, %arg6: memref<8x1xf32, #tpu.memory_space<vmem>>, %arg7: memref<8x1xf32, #tpu.memory_space<vmem>>, %arg8: memref<1x1x8x32xf32, #tpu.memory_space<vmem>>, %arg9: memref<8x32xf32, #tpu.memory_space<vmem>>, %arg10: memref<8x1xf32, #tpu.memory_space<vmem>>) attributes {dimension_semantics = [#tpu.dimension_semantics<parallel>, #tpu.dimension_semantics<parallel>, #tpu.dimension_semantics<arbitrary>], iteration_bounds = array<i64: 2, 1, 2>, scalar_prefetch = 0 : i64, scratch_operands = 2 : i64, tpu.core_type = #tpu.core_type<tc>, window_params = [{transform_indices = @transform_0, window_bounds = array<i64: 1, 32, 128>}, {pipeline_mode = #tpu.pipeline_mode<synchronous>, transform_indices = @transform_1, window_bounds = array<i64: 8, 32>}, {pipeline_mode = #tpu.pipeline_mode<synchronous>, transform_indices = @transform_2, window_bounds = array<i64: 8, 32>}, {pipeline_mode = #tpu.pipeline_mode<synchronous>, transform_indices = @transform_3, window_bounds = array<i64: 8, 1>}, {pipeline_mode = #tpu.pipeline_mode<synchronous>, transform_indices = @transform_4, window_bounds = array<i64: 8, 1>}, {transform_indices = @transform_5, window_bounds = array<i64: 1, 1, 8, 32>}]} {
    %c0_i32 = arith.constant 0 : i32
    %0 = arith.cmpi eq, %arg2, %c0_i32 : i32
    %1 = arith.extui %0 : i1 to i32
    %c0_i32_0 = arith.constant 0 : i32
    %2 = arith.cmpi ne, %1, %c0_i32_0 : i32
    scf.if %2 {
      %cst_25 = arith.constant 0.000000e+00 : f32
      %41 = vector.broadcast %cst_25 : f32 to vector<8x32xf32>
      %c0_26 = arith.constant 0 : index
      %c0_27 = arith.constant 0 : index
      %42 = vector.load %arg9[%c0_26, %c0_27] : memref<8x32xf32, #tpu.memory_space<vmem>>, vector<8x32xf32>
      tpu.vector_store %arg9[%c0_26, %c0_27], %41 {strides = array<i32>} : memref<8x32xf32, #tpu.memory_space<vmem>>, vector<8x32xf32>,
      %cst_28 = arith.constant 0.000000e+00 : f32
      %43 = vector.broadcast %cst_28 : f32 to vector<8x1xf32>
      %c0_29 = arith.constant 0 : index
      %c0_30 = arith.constant 0 : index
      %44 = vector.load %arg10[%c0_29, %c0_30] : memref<8x1xf32, #tpu.memory_space<vmem>>, vector<8x1xf32>
      tpu.vector_store %arg10[%c0_29, %c0_30], %43 {strides = array<i32>} : memref<8x1xf32, #tpu.memory_space<vmem>>, vector<8x1xf32>,
    } else {
    }
    %c0 = arith.constant 0 : index
    %c0_1 = arith.constant 0 : index
    %c0_2 = arith.constant 0 : index
    %3 = vector.load %arg3[%c0, %c0_1, %c0_2] : memref<1x32x128xf32, #tpu.memory_space<vmem>>, vector<1x32x128xf32>
    %4 = vector.shape_cast %3 : vector<1x32x128xf32> to vector<32x128xf32>
    %cst = arith.constant 1.000000e+00 : f32
    %5 = vector.broadcast %cst : f32 to vector<1x32xf32>
    %6 = arith.mulf %4, %4 : vector<32x128xf32>
    %cst_3 = arith.constant dense<0.000000e+00> : vector<1x128xf32>
    %7 = tpu.matmul %5, %6, %cst_3 {dimension_numbers = #tpu.dot_dimension_numbers<[1], [0], [0], [1], [0, 0, 1, 1], [], []>, precision = #tpu.contract_precision<fp32>} : vector<1x32xf32>, vector<32x128xf32>, vector<1x128xf32> -> vector<1x128xf32>
    %c0_4 = arith.constant 0 : index
    %c0_5 = arith.constant 0 : index
    %8 = vector.load %arg5[%c0_4, %c0_5] : memref<8x32xf32, #tpu.memory_space<vmem>>, vector<8x32xf32>
    %cst_6 = arith.constant dense<0.000000e+00> : vector<8x128xf32>
    %9 = tpu.matmul %8, %4, %cst_6 {dimension_numbers = #tpu.dot_dimension_numbers<[1], [0], [0], [1], [0, 0, 1, 1], [], []>, precision = #tpu.contract_precision<fp32>} : vector<8x32xf32>, vector<32x128xf32>, vector<8x128xf32> -> vector<8x128xf32>
    %c0_7 = arith.constant 0 : index
    %c0_8 = arith.constant 0 : index
    %10 = vector.load %arg6[%c0_7, %c0_8] : memref<8x1xf32, #tpu.memory_space<vmem>>, vector<8x1xf32>
    %11 = vector.broadcast %10 : vector<8x1xf32> to vector<8x128xf32>
    %12 = vector.broadcast %7 : vector<1x128xf32> to vector<8x128xf32>
    %13 = arith.mulf %11, %12 : vector<8x128xf32>
    %c0_9 = arith.constant 0 : index
    %c0_10 = arith.constant 0 : index
    %14 = vector.load %arg7[%c0_9, %c0_10] : memref<8x1xf32, #tpu.memory_space<vmem>>, vector<8x1xf32>
    %15 = vector.broadcast %14 : vector<8x1xf32> to vector<8x128xf32>
    %16 = arith.addf %13, %15 : vector<8x128xf32>
    %17 = arith.addf %16, %9 : vector<8x128xf32>
    %cst_11 = arith.constant dense<0xFF800000> : vector<128xf32>
    %18 = vector.multi_reduction <maximumf>, %17, %cst_11 [0] : vector<8x128xf32> to vector<128xf32>
    %19 = vector.shape_cast %18 : vector<128xf32> to vector<1x128xf32>
    %20 = vector.broadcast %19 : vector<1x128xf32> to vector<8x128xf32>
    %21 = arith.subf %17, %20 : vector<8x128xf32>
    %22 = math.exp %21 : vector<8x128xf32>
    %cst_12 = arith.constant dense<0.000000e+00> : vector<128xf32>
    %23 = vector.multi_reduction <add>, %22, %cst_12 [0] : vector<8x128xf32> to vector<128xf32>
    %24 = vector.shape_cast %23 : vector<128xf32> to vector<1x128xf32>
    %cst_13 = arith.constant 1.000000e+00 : f32
    %25 = vector.broadcast %cst_13 : f32 to vector<1x128xf32>
    %26 = arith.divf %25, %24 : vector<1x128xf32>
    %27 = vector.broadcast %26 : vector<1x128xf32> to vector<8x128xf32>
    %28 = arith.mulf %22, %27 : vector<8x128xf32>
    %cst_14 = arith.constant dense<0.000000e+00> : vector<8x32xf32>
    %29 = tpu.matmul %28, %4, %cst_14 {dimension_numbers = #tpu.dot_dimension_numbers<[1], [1], [0], [0], [0, 0, 1, 0], [], []>, precision = #tpu.contract_precision<fp32>} : vector<8x128xf32>, vector<32x128xf32>, vector<8x32xf32> -> vector<8x32xf32>
    %c0_15 = arith.constant 0 : index
    %c0_16 = arith.constant 0 : index
    %30 = vector.load %arg9[%c0_15, %c0_16] : memref<8x32xf32, #tpu.memory_space<vmem>>, vector<8x32xf32>
    %31 = arith.addf %30, %29 : vector<8x32xf32>
    %c0_17 = arith.constant 0 : index
    %c0_18 = arith.constant 0 : index
    %32 = vector.load %arg9[%c0_17, %c0_18] : memref<8x32xf32, #tpu.memory_space<vmem>>, vector<8x32xf32>
    tpu.vector_store %arg9[%c0_17, %c0_18], %31 {strides = array<i32>} : memref<8x32xf32, #tpu.memory_space<vmem>>, vector<8x32xf32>,
    %c0_19 = arith.constant 0 : index
    %c0_20 = arith.constant 0 : index
    %33 = vector.load %arg10[%c0_19, %c0_20] : memref<8x1xf32, #tpu.memory_space<vmem>>, vector<8x1xf32>
    %cst_21 = arith.constant dense<0.000000e+00> : vector<8xf32>
    %34 = vector.multi_reduction <add>, %28, %cst_21 [1] : vector<8x128xf32> to vector<8xf32>
    %35 = vector.shape_cast %34 : vector<8xf32> to vector<8x1xf32>
    %36 = arith.addf %33, %35 : vector<8x1xf32>
    %c0_22 = arith.constant 0 : index
    %c0_23 = arith.constant 0 : index
    %37 = vector.load %arg10[%c0_22, %c0_23] : memref<8x1xf32, #tpu.memory_space<vmem>>, vector<8x1xf32>
    tpu.vector_store %arg10[%c0_22, %c0_23], %36 {strides = array<i32>} : memref<8x1xf32, #tpu.memory_space<vmem>>, vector<8x1xf32>,
    %c1_i32 = arith.constant 1 : i32
    %38 = arith.cmpi eq, %arg2, %c1_i32 : i32
    %39 = arith.extui %38 : i1 to i32
    %c0_i32_24 = arith.constant 0 : i32
    %40 = arith.cmpi ne, %39, %c0_i32_24 : i32
    scf.if %40 {
      %c0_25 = arith.constant 0 : index
      %c0_26 = arith.constant 0 : index
      %41 = vector.load %arg9[%c0_25, %c0_26] : memref<8x32xf32, #tpu.memory_space<vmem>>, vector<8x32xf32>
      %c0_27 = arith.constant 0 : index
      %c0_28 = arith.constant 0 : index
      %42 = vector.load %arg10[%c0_27, %c0_28] : memref<8x1xf32, #tpu.memory_space<vmem>>, vector<8x1xf32>
      %c0_29 = arith.constant 0 : index
      %c0_30 = arith.constant 0 : index
      %43 = vector.load %arg4[%c0_29, %c0_30] : memref<8x32xf32, #tpu.memory_space<vmem>>, vector<8x32xf32>
      %44 = vector.broadcast %42 : vector<8x1xf32> to vector<8x32xf32>
      %45 = arith.mulf %44, %43 : vector<8x32xf32>
      %46 = arith.subf %41, %45 : vector<8x32xf32>
      %c0_31 = arith.constant 0 : index
      %c0_32 = arith.constant 0 : index
      %c0_33 = arith.constant 0 : index
      %c0_34 = arith.constant 0 : index
      %47 = vector.load %arg8[%c0_31, %c0_32, %c0_33, %c0_34] : memref<1x1x8x32xf32, #tpu.memory_space<vmem>>, vector<1x1x8x32xf32>
      %48 = vector.shape_cast %47 : vector<1x1x8x32xf32> to vector<8x32xf32>
      %49 = vector.shape_cast %46 : vector<8x32xf32> to vector<1x1x8x32xf32>
      tpu.vector_store %arg8[%c0_31, %c0_32, %c0_33, %c0_34], %49 {strides = array<i32>} : memref<1x1x8x32xf32, #tpu.memory_space<vmem>>, vector<1x1x8x32xf32>,
    } else {
    }
    return
  }
  func.func @transform_0(%arg0: i32, %arg1: i32, %arg2: i32) -> (i32, i32, i32) {
    %c2_i32 = arith.constant 2 : i32
    %0 = arith.muli %arg1, %c2_i32 : i32
    %1 = arith.addi %0, %arg2 : i32
    %c0_i32 = arith.constant 0 : i32
    %c0_i32_0 = arith.constant 0 : i32
    return %arg0, %c0_i32, %1 : i32, i32, i32
  }
  func.func @transform_1(%arg0: i32, %arg1: i32, %arg2: i32) -> (i32, i32) {
    %c0_i32 = arith.constant 0 : i32
    %c0_i32_0 = arith.constant 0 : i32
    %c0_i32_1 = arith.constant 0 : i32
    return %c0_i32, %c0_i32_0 : i32, i32
  }
  func.func @transform_2(%arg0: i32, %arg1: i32, %arg2: i32) -> (i32, i32) {
    %c0_i32 = arith.constant 0 : i32
    %c0_i32_0 = arith.constant 0 : i32
    %c0_i32_1 = arith.constant 0 : i32
    return %c0_i32, %c0_i32_0 : i32, i32
  }
  func.func @transform_3(%arg0: i32, %arg1: i32, %arg2: i32) -> (i32, i32) {
    %c0_i32 = arith.constant 0 : i32
    %c0_i32_0 = arith.constant 0 : i32
    %c0_i32_1 = arith.constant 0 : i32
    return %c0_i32, %c0_i32_0 : i32, i32
  }
  func.func @transform_4(%arg0: i32, %arg1: i32, %arg2: i32) -> (i32, i32) {
    %c0_i32 = arith.constant 0 : i32
    %c0_i32_0 = arith.constant 0 : i32
    %c0_i32_1 = arith.constant 0 : i32
    return %c0_i32, %c0_i32_0 : i32, i32
  }
  func.func @transform_5(%arg0: i32, %arg1: i32, %arg2: i32) -> (i32, i32, i32, i32) {
    %c0_i32 = arith.constant 0 : i32
    %c0_i32_0 = arith.constant 0 : i32
    %c0_i32_1 = arith.constant 0 : i32
    return %arg0, %arg1, %c0_i32, %c0_i32_0 : i32, i32, i32, i32
  }
}

</mosaic_0001>

<llo_original>
// kernel: tpu_custom_call.1
$region0: #{tpu_custom_call.1}
  #allocation0 [shape = 'u32[]', space=smem, size = 0x4, offset = 0x4, fixed_abs, tag = 'smem constant byte address 0x4 - core index']
  #allocation1 [shape = 'u32[72,128]{1,0:T(1,128)}', space=vmem, size = 0x9000, scoped, tag = 'internal scratch']
  #allocation2 [shape = 'f32[8,32]{1,0:T(8,128)}', space=vmem, size = 0x1000, scoped, tag = 'scratch operand']
  #allocation3 [shape = 'f32[8,1]{1,0:T(8,128)}', space=vmem, size = 0x1000, scoped, tag = 'scratch operand']
  %s0 = inlined_call_operand.hbm [shape: f32[2,32,256], index: 0, kind: input, shape index: {}]
  %s1 = inlined_call_operand.vmem [shape: f32[8,32], index: 1, kind: input, shape index: {}]
  %s2 = inlined_call_operand.vmem [shape: f32[8,32], index: 2, kind: input, shape index: {}]
  %s3 = inlined_call_operand.vmem [shape: f32[8,1], index: 3, kind: input, shape index: {}]
  %s4 = inlined_call_operand.vmem [shape: f32[8,1], index: 4, kind: input, shape index: {}]
  %s5 = inlined_call_operand.hbm [shape: f32[2,1,8,32], index: 5, kind: output, shape index: {}]
  %s6 = sld [smem:[#allocation0]]
  $region65: #{tpu_custom_call.1} parent=0
    _
  %s8 = ssub.s32 1, %s6
  %s9 = scalar_select 0, %s8, %s6
  $region1: #{tpu_custom_call.1} parent=0
    #allocation4 [shape = 'u8[32768]{0}', space=vmem, size = 0x8000, scoped, tag = 'input window, operand 0']
    #allocation5 [shape = 's32[2]{0}', space=sflag, size = 0x8, scoped, tag = 'scoped memory for tpu_custom_call.1']
    #allocation6 [shape = 's32[2]{0}', space=sflag, size = 0x8, scoped, tag = 'scoped memory for tpu_custom_call.1']
    #allocation7 [shape = 'u8[8192]{0}', space=vmem, size = 0x2000, scoped, tag = 'output window, operand 0']
    %10 = vsyncpa [#allocation5], 0
    %s11 = scalar_lea.sflag [#allocation5], 1
    %12 = vsyncpa %s11, 0
    %13 = vsyncpa [#allocation6], 0
    %s14 = scalar_lea.sflag [#allocation6], 1
    %15 = vsyncpa %s14, 0
    loop: start=0, step=1, limit=6
    $region2: #{tpu_custom_call.1} parent=1 // loop_pre_header
      _
    $region3: #{tpu_custom_call.1} parent=1 // loop_header
      %s17 = sphi 0, %s21
      %p18 = scmp.ge.s32.totalorder %s17, 6
      %s24 = sphi 0, %s43
      %s25 = sphi 0, %s39
      %s26 = sphi 0, %s35
      %s27 = sphi 0, %s24
      %s28 = sphi 0, %s25
      %s29 = sphi 0, %s26
      %s30 = sphi 0, %s27
      %s31 = sphi 0, %s28
      %s32 = sphi 0, %s29
      %s52 = sphi 0, %s54
      %s55 = sphi 0, %s52
      %s56 = sphi 0, %s55
      %s72 = sphi 0, %s56
      %s76 = sphi 0, %s76
      %s78 = sphi 0, %s76
      %s79 = sphi 0, %s78
      %s93 = sphi 0, %s79
      %s97 = sphi 0, %s97
      %s99 = sphi 0, %s97
      %s100 = sphi 0, %s99
      %s114 = sphi 0, %s100
      %s118 = sphi 0, %s118
      %s120 = sphi 0, %s118
      %s121 = sphi 0, %s120
      %s135 = sphi 0, %s121
      %s139 = sphi 0, %s139
      %s141 = sphi 0, %s139
      %s142 = sphi 0, %s141
      %s156 = sphi 0, %s142
      %s164 = sphi 0, %s166
      %s167 = sphi 0, %s164
      %s168 = sphi 0, %s167
      %s184 = sphi 0, %s168
    $region4: #{tpu_custom_call.1} parent=1 // loop_header_branch
      %20 = sbr.rel (%p18) target = $region8
    $region5: #{tpu_custom_call.1} parent=1 // loop_body
      %s22 = ssub.s32 %s17, 1
      %s23 = ssub.s32 %s17, 2
      %s33 = sadd.s32 1, %s26
      %p34 = scmp.ge.s32.totalorder %s33, 2
      %s35 = scalar_select %p34, 0, %s33
      %s36 = sadd.s32 1, %s25
      %s37 = scalar_select %p34, %s36, %s25
      %p38 = scmp.ge.s32.totalorder %s37, 1
      %s39 = scalar_select %p38, 0, %s37
      %s40 = sadd.s32 1, %s24
      %s41 = scalar_select %p38, %s40, %s24
      %p42 = scmp.ge.s32.totalorder %s41, 2
      %s43 = scalar_select %p42, 0, %s41
      %s44 = smul.u32 %s25, 2
      %s45 = sadd.s32 %s44, %s26
      %s46 = smul.u32 %s39, 2
      %s47 = sadd.s32 %s46, %s35
      %s48 = ssub.s32 %s24, %s43
      %s49 = ssub.s32 %s45, %s47
      %s50 = sor.u32 %s48, %s49
      %p51 = scmp.eq.s32.totalorder %s50, 0
      %s53 = sadd.s32 %s52, 1
      %s54 = scalar_select %p51, %s52, %s53
      %p57 = pneg %p51
      %p58 = scmp.eq.s32.totalorder %s17, 3
      %p59 = por %p57, %p58
      %p60 = scmp.ne.s32.totalorder %s52, %s55
      %p61 = scmp.eq.s32.totalorder %s17, 0
      %p62 = por %p60, %p61
      %p63 = scmp.ne.s32.totalorder %s52, %s55
      %p64 = scmp.eq.s32.totalorder %s22, 3
      %p65 = por %p63, %p64
      %p66 = scmp.ne.s32.totalorder %s55, %s56
      %p67 = scmp.eq.s32.totalorder %s22, 0
      %p68 = por %p66, %p67
      %p69 = scmp.ne.s32.totalorder %s55, %s56
      %p70 = scmp.eq.s32.totalorder %s23, 3
      %p71 = por %p69, %p70
      %p73 = scmp.ne.s32.totalorder %s56, %s72
      %p74 = scmp.eq.s32.totalorder %s23, 0
      %p75 = por %p73, %p74
      %s77 = sadd.s32 %s76, 1
      %p80 = scmp.eq.s32.totalorder %s17, 3
      %p81 = scmp.ne.s32.totalorder %s76, %s78
      %p82 = scmp.eq.s32.totalorder %s17, 0
      %p83 = por %p81, %p82
      %p84 = scmp.ne.s32.totalorder %s76, %s78
      %p85 = scmp.eq.s32.totalorder %s22, 3
      %p86 = por %p84, %p85
      %p87 = scmp.ne.s32.totalorder %s78, %s79
      %p88 = scmp.eq.s32.totalorder %s22, 0
      %p89 = por %p87, %p88
      %p90 = scmp.ne.s32.totalorder %s78, %s79
      %p91 = scmp.eq.s32.totalorder %s23, 3
      %p92 = por %p90, %p91
      %p94 = scmp.ne.s32.totalorder %s79, %s93
      %p95 = scmp.eq.s32.totalorder %s23, 0
      %p96 = por %p94, %p95
      %s98 = sadd.s32 %s97, 1
      %p101 = scmp.eq.s32.totalorder %s17, 3
      %p102 = scmp.ne.s32.totalorder %s97, %s99
      %p103 = scmp.eq.s32.totalorder %s17, 0
      %p104 = por %p102, %p103
      %p105 = scmp.ne.s32.totalorder %s97, %s99
      %p106 = scmp.eq.s32.totalorder %s22, 3
      %p107 = por %p105, %p106
      %p108 = scmp.ne.s32.totalorder %s99, %s100
      %p109 = scmp.eq.s32.totalorder %s22, 0
      %p110 = por %p108, %p109
      %p111 = scmp.ne.s32.totalorder %s99, %s100
      %p112 = scmp.eq.s32.totalorder %s23, 3
      %p113 = por %p111, %p112
      %p115 = scmp.ne.s32.totalorder %s100, %s114
      %p116 = scmp.eq.s32.totalorder %s23, 0
      %p117 = por %p115, %p116
      %s119 = sadd.s32 %s118, 1
      %p122 = scmp.eq.s32.totalorder %s17, 3
      %p123 = scmp.ne.s32.totalorder %s118, %s120
      %p124 = scmp.eq.s32.totalorder %s17, 0
      %p125 = por %p123, %p124
      %p126 = scmp.ne.s32.totalorder %s118, %s120
      %p127 = scmp.eq.s32.totalorder %s22, 3
      %p128 = por %p126, %p127
      %p129 = scmp.ne.s32.totalorder %s120, %s121
      %p130 = scmp.eq.s32.totalorder %s22, 0
      %p131 = por %p129, %p130
      %p132 = scmp.ne.s32.totalorder %s120, %s121
      %p133 = scmp.eq.s32.totalorder %s23, 3
      %p134 = por %p132, %p133
      %p136 = scmp.ne.s32.totalorder %s121, %s135
      %p137 = scmp.eq.s32.totalorder %s23, 0
      %p138 = por %p136, %p137
      %s140 = sadd.s32 %s139, 1
      %p143 = scmp.eq.s32.totalorder %s17, 3
      %p144 = scmp.ne.s32.totalorder %s139, %s141
      %p145 = scmp.eq.s32.totalorder %s17, 0
      %p146 = por %p144, %p145
      %p147 = scmp.ne.s32.totalorder %s139, %s141
      %p148 = scmp.eq.s32.totalorder %s22, 3
      %p149 = por %p147, %p148
      %p150 = scmp.ne.s32.totalorder %s141, %s142
      %p151 = scmp.eq.s32.totalorder %s22, 0
      %p152 = por %p150, %p151
      %p153 = scmp.ne.s32.totalorder %s141, %s142
      %p154 = scmp.eq.s32.totalorder %s23, 3
      %p155 = por %p153, %p154
      %p157 = scmp.ne.s32.totalorder %s142, %s156
      %p158 = scmp.eq.s32.totalorder %s23, 0
      %p159 = por %p157, %p158
      %s160 = ssub.s32 %s24, %s43
      %s161 = ssub.s32 %s25, %s39
      %s162 = sor.u32 %s160, %s161
      %p163 = scmp.eq.s32.totalorder %s162, 0
      %s165 = sadd.s32 %s164, 1
      %s166 = scalar_select %p163, %s164, %s165
      %p169 = pneg %p163
      %p170 = scmp.eq.s32.totalorder %s17, 3
      %p171 = por %p169, %p170
      %p172 = scmp.ne.s32.totalorder %s164, %s167
      %p173 = scmp.eq.s32.totalorder %s17, 0
      %p174 = por %p172, %p173
      %p175 = scmp.ne.s32.totalorder %s164, %s167
      %p176 = scmp.eq.s32.totalorder %s22, 3
      %p177 = por %p175, %p176
      %p178 = scmp.ne.s32.totalorder %s167, %s168
      %p179 = scmp.eq.s32.totalorder %s22, 0
      %p180 = por %p178, %p179
      %p181 = scmp.ne.s32.totalorder %s167, %s168
      %p182 = scmp.eq.s32.totalorder %s23, 3
      %p183 = por %p181, %p182
      %p185 = scmp.ne.s32.totalorder %s168, %s184
      %p186 = scmp.eq.s32.totalorder %s23, 0
      %p187 = por %p185, %p186
      %p188 = scmp.le.s32.totalorder 1, %s17
      %p189 = scmp.lt.s32.totalorder %s17, 5
      %p190 = pnand %p188, %p189
      %p191 = pneg %p190
      // Predicated region
      $region9: #{tpu_custom_call.1} parent=5 // pred_check
        _
      $region10: #{tpu_custom_call.1} parent=5 // pred_check_branch
        %193 = sbr.rel (%p190) target = $region12
      $region11: #{tpu_custom_call.1} parent=5 // pred_region
        %s194 = ssub.s32 %s17, 1
        // Predicated region
        $region13: #{tpu_custom_call.1} parent=11 // pred_check
          %p195 = pneg %p89
        $region14: #{tpu_custom_call.1} parent=11 // pred_check_branch
          %197 = sbr.rel (%p195) target = $region16
        $region15: #{tpu_custom_call.1} parent=11 // pred_region
          _
        $region16: #{tpu_custom_call.1} parent=11 // pred_fallthru
          _
        // Predicated region
        $region17: #{tpu_custom_call.1} parent=11 // pred_check
          %p198 = pneg %p110
        $region18: #{tpu_custom_call.1} parent=11 // pred_check_branch
          %200 = sbr.rel (%p198) target = $region20
        $region19: #{tpu_custom_call.1} parent=11 // pred_region
          _
        $region20: #{tpu_custom_call.1} parent=11 // pred_fallthru
          _
        // Predicated region
        $region21: #{tpu_custom_call.1} parent=11 // pred_check
          %p201 = pneg %p131
        $region22: #{tpu_custom_call.1} parent=11 // pred_check_branch
          %203 = sbr.rel (%p201) target = $region24
        $region23: #{tpu_custom_call.1} parent=11 // pred_region
          _
        $region24: #{tpu_custom_call.1} parent=11 // pred_fallthru
          _
        // Predicated region
        $region25: #{tpu_custom_call.1} parent=11 // pred_check
          %p204 = pneg %p152
        $region26: #{tpu_custom_call.1} parent=11 // pred_check_branch
          %206 = sbr.rel (%p204) target = $region28
        $region27: #{tpu_custom_call.1} parent=11 // pred_region
          _
        $region28: #{tpu_custom_call.1} parent=11 // pred_fallthru
          _
      $region12: #{tpu_custom_call.1} parent=5 // pred_fallthru
        _
      %p207 = scmp.lt.s32.totalorder %s17, 4
      // Predicated region
      $region29: #{tpu_custom_call.1} parent=5 // pred_check
        %p208 = pneg %p207
      $region30: #{tpu_custom_call.1} parent=5 // pred_check_branch
        %210 = sbr.rel (%p208) target = $region32
      $region31: #{tpu_custom_call.1} parent=5 // pred_region
        // Predicated region
        $region33: #{tpu_custom_call.1} parent=31 // pred_check
          %p211 = pneg %p62
        $region34: #{tpu_custom_call.1} parent=31 // pred_check_branch
          %213 = sbr.rel (%p211) target = $region36
        $region35: #{tpu_custom_call.1} parent=31 // pred_region
          %s214 = sand.u32 %s52, 1
          %s215 = scalar_lea.sflag [#allocation5], %s214
          %s216 = sand.u32 %s52, 1
          %s217 = smul.addr %s216, 32
          %s218 = scalar_lea.vmem [#allocation4], %s217
          %s219 = smul.u32 %s25, 2
          %s220 = sadd.s32 %s219, %s26
          %222 = vsyncadd %s215, 0
          %s223 = smul.addr %s24, 8
          %s224 = sadd.s32 %s220, %s223
          %s225 = smul.addr %s224, 8
          %s226 = scalar_lea.hbm %s0, %s225
          %s227 = sshll.u32 %s226, 4
          %s228 = int_to_ptr.hbm [resolvable:$true] %s227
          %s229 = sshll.u32 %s218, 4
          %s230 = int_to_ptr.vmem [resolvable:$true] %s229
          %235 = dma.hbm_to_vmem [thread:$0]  %s228, 512, %s230, %s215, 256, 128, 8
        $region36: #{tpu_custom_call.1} parent=31 // pred_fallthru
          _
      $region32: #{tpu_custom_call.1} parent=5 // pred_fallthru
        _
      %p236 = scmp.le.s32.totalorder 1, %s17
      %p237 = scmp.lt.s32.totalorder %s17, 5
      %p238 = pnand %p236, %p237
      %p239 = pneg %p238
      // Predicated region
      $region37: #{tpu_custom_call.1} parent=5 // pred_check
        _
      $region38: #{tpu_custom_call.1} parent=5 // pred_check_branch
        %241 = sbr.rel (%p238) target = $region40
      $region39: #{tpu_custom_call.1} parent=5 // pred_region
        %s242 = ssub.s32 %s17, 1
        %s243 = sand.u32 %s55, 1
        %s244 = scalar_lea.sflag [#allocation5], %s243
        %s245 = sand.u32 %s55, 1
        %s246 = smul.addr %s245, 32
        %s247 = scalar_lea.vmem [#allocation4], %s246
        // Predicated region
        $region41: #{tpu_custom_call.1} parent=39 // pred_check
          %p248 = pneg %p68
        $region42: #{tpu_custom_call.1} parent=39 // pred_check_branch
          %250 = sbr.rel (%p248) target = $region44
        $region43: #{tpu_custom_call.1} parent=39 // pred_region
          %252 = dma.done %s244, 512
        $region44: #{tpu_custom_call.1} parent=39 // pred_fallthru
          _
        %s253 = sand.u32 %s55, 1
        %s254 = scalar_lea.sflag [#allocation5], %s253
        %s255 = sand.u32 %s55, 1
        %s256 = smul.addr %s255, 32
        %s257 = scalar_lea.vmem [#allocation4], %s256
        %p258 = pneg %p68
        %p259 = pneg %p65
        %p260 = pneg %p89
        %p261 = pneg %p86
        %p262 = pneg %p110
        %p263 = pneg %p107
        %p264 = pneg %p131
        %p265 = pneg %p128
        %p266 = pneg %p152
        %p267 = pneg %p149
        %p268 = pneg %p180
        %p269 = pneg %p177
        %s270 = sand.u32 %s167, 1
        %s271 = scalar_lea.sflag [#allocation6], %s270
        %s272 = sand.u32 %s167, 1
        %s273 = smul.addr %s272, 8
        %s274 = scalar_lea.vmem [#allocation7], %s273
        %s275 = smul.u32 %s28, 2
        %s276 = sadd.s32 %s275, %s29
        %p277 = scmp.eq.s32.totalorder %s29, 0
        // Predicated region
        $region45: #{tpu_custom_call.1} parent=39 // pred_check
          %p278 = pneg %p277
        $region46: #{tpu_custom_call.1} parent=39 // pred_check_branch
          %280 = sbr.rel (%p278) target = $region48
        $region47: #{tpu_custom_call.1} parent=39 // pred_region
          %vm281 = vcmask 261120
          %282 = vst.msk [vmem:[#allocation2] sm:$0xff] %vm281, 0.0
          %vm283 = vcmask 7168
          %284 = vst.msk [vmem:[#allocation3] sm:$0xff] %vm283, 0.0
        $region48: #{tpu_custom_call.1} parent=39 // pred_fallthru
          _
        %v285 = vld [vmem:[%s247] sm:$0xff]
        %v286 = vld [vmem:[%s247 + $0x8] sm:$0xff]
        %v287 = vld [vmem:[%s247 + $0x10] sm:$0xff]
        %v288 = vld [vmem:[%s247 + $0x18] sm:$0xff]
        %v289 = vmul.f32 %v285, %v285
        %v290 = vmul.f32 %v286, %v286
        %v291 = vmul.f32 %v287, %v287
        %v292 = vmul.f32 %v288, %v288
        %vm293 = vcmask 261120
        %v295 = vsel %vm293, 1.0, 0
        %297 = vmatpush.msra.mxu0 0.0
        %298 = vmatpush.msra.mxu0 0.0
        %299 = vmatpush.msra.mxu0 0.0
        %300 = vmatpush.msra.mxu0 0.0
        %301 = vmatpush.msra.mxu0 0.0
        %302 = vmatpush.msra.mxu0 0.0
        %303 = vmatpush.msra.mxu0 0.0
        %304 = vmatpush.msra.mxu0 0.0
        %305 = vmatpush.msra.mxu0 0.0
        %306 = vmatpush.msra.mxu0 0.0
        %307 = vmatpush.msra.mxu0 0.0
        %308 = vmatpush.msra.mxu0 0.0
        %v309 = vand.u32 %v292, 4294901760
        %310 = vmatpush.msra.mxu0 %v309
        %v311 = vand.u32 %v291, 4294901760
        %312 = vmatpush.msra.mxu0 %v311
        %v313 = vand.u32 %v290, 4294901760
        %314 = vmatpush.msra.mxu0 %v313
        %v315 = vand.u32 %v289, 4294901760
        %316 = vmatpush.msra.mxu0 %v315
        %v317 = vand.u32 %v295, 4294901760
        %v318 = vsub.f32 %v295, %v317
        %v319 = vand.u32 %v318, 4294901760
        %v320 = vsub.f32 %v318, %v319
        %v321 = vand.u32 %v320, 4294901760
        %322 = vmatmul.f32.gmra.mxu0 %v321
        %v323 = vpop.f32.mrf.mxu0
        %v324 = vadd.f32 0.0, %v323
        %325 = vdwg.mxu0
        %326 = vmatpush.msra.mxu0 0.0
        %327 = vmatpush.msra.mxu0 0.0
        %328 = vmatpush.msra.mxu0 0.0
        %329 = vmatpush.msra.mxu0 0.0
        %330 = vmatpush.msra.mxu0 0.0
        %331 = vmatpush.msra.mxu0 0.0
        %332 = vmatpush.msra.mxu0 0.0
        %333 = vmatpush.msra.mxu0 0.0
        %334 = vmatpush.msra.mxu0 0.0
        %335 = vmatpush.msra.mxu0 0.0
        %336 = vmatpush.msra.mxu0 0.0
        %337 = vmatpush.msra.mxu0 0.0
        %v338 = vand.u32 %v292, 4294901760
        %v339 = vsub.f32 %v292, %v338
        %v340 = vand.u32 %v339, 4294901760
        %v341 = vsub.f32 %v339, %v340
        %v342 = vand.u32 %v341, 4294901760
        %343 = vmatpush.msra.mxu0 %v342
        %v344 = vand.u32 %v291, 4294901760
        %v345 = vsub.f32 %v291, %v344
        %v346 = vand.u32 %v345, 4294901760
        %v347 = vsub.f32 %v345, %v346
        %v348 = vand.u32 %v347, 4294901760
        %349 = vmatpush.msra.mxu0 %v348
        %v350 = vand.u32 %v290, 4294901760
        %v351 = vsub.f32 %v290, %v350
        %v352 = vand.u32 %v351, 4294901760
        %v353 = vsub.f32 %v351, %v352
        %v354 = vand.u32 %v353, 4294901760
        %355 = vmatpush.msra.mxu0 %v354
        %v356 = vand.u32 %v289, 4294901760
        %v357 = vsub.f32 %v289, %v356
        %v358 = vand.u32 %v357, 4294901760
        %v359 = vsub.f32 %v357, %v358
        %v360 = vand.u32 %v359, 4294901760
        %361 = vmatpush.msra.mxu0 %v360
        %v362 = vand.u32 %v295, 4294901760
        %363 = vmatmul.f32.gmra.mxu0 %v362
        %v364 = vpop.f32.mrf.mxu0
        %v365 = vadd.f32 %v324, %v364
        %366 = vdwg.mxu0
        %367 = vmatpush.msra.mxu0 0.0
        %368 = vmatpush.msra.mxu0 0.0
        %369 = vmatpush.msra.mxu0 0.0
        %370 = vmatpush.msra.mxu0 0.0
        %371 = vmatpush.msra.mxu0 0.0
        %372 = vmatpush.msra.mxu0 0.0
        %373 = vmatpush.msra.mxu0 0.0
        %374 = vmatpush.msra.mxu0 0.0
        %375 = vmatpush.msra.mxu0 0.0
        %376 = vmatpush.msra.mxu0 0.0
        %377 = vmatpush.msra.mxu0 0.0
        %378 = vmatpush.msra.mxu0 0.0
        %v379 = vand.u32 %v292, 4294901760
        %v380 = vsub.f32 %v292, %v379
        %381 = vmatpush.msra.mxu0 %v380
        %v382 = vand.u32 %v291, 4294901760
        %v383 = vsub.f32 %v291, %v382
        %384 = vmatpush.msra.mxu0 %v383
        %v385 = vand.u32 %v290, 4294901760
        %v386 = vsub.f32 %v290, %v385
        %387 = vmatpush.msra.mxu0 %v386
        %v388 = vand.u32 %v289, 4294901760
        %v389 = vsub.f32 %v289, %v388
        %390 = vmatpush.msra.mxu0 %v389
        %v391 = vand.u32 %v295, 4294901760
        %v392 = vsub.f32 %v295, %v391
        %393 = vmatmul.f32.gmra.mxu0 %v392
        %v394 = vpop.f32.mrf.mxu0
        %v395 = vadd.f32 %v365, %v394
        %396 = vdwg.mxu0
        %397 = vmatpush.msra.mxu0 0.0
        %398 = vmatpush.msra.mxu0 0.0
        %399 = vmatpush.msra.mxu0 0.0
        %400 = vmatpush.msra.mxu0 0.0
        %401 = vmatpush.msra.mxu0 0.0
        %402 = vmatpush.msra.mxu0 0.0
        %403 = vmatpush.msra.mxu0 0.0
        %404 = vmatpush.msra.mxu0 0.0
        %405 = vmatpush.msra.mxu0 0.0
        %406 = vmatpush.msra.mxu0 0.0
        %407 = vmatpush.msra.mxu0 0.0
        %408 = vmatpush.msra.mxu0 0.0
        %v409 = vand.u32 %v292, 4294901760
        %410 = vmatpush.msra.mxu0 %v409
        %v411 = vand.u32 %v291, 4294901760
        %412 = vmatpush.msra.mxu0 %v411
        %v413 = vand.u32 %v290, 4294901760
        %414 = vmatpush.msra.mxu0 %v413
        %v415 = vand.u32 %v289, 4294901760
        %416 = vmatpush.msra.mxu0 %v415
        %v417 = vand.u32 %v295, 4294901760
        %v418 = vsub.f32 %v295, %v417
        %v419 = vand.u32 %v418, 4294901760
        %420 = vmatmul.f32.gmra.mxu0 %v419
        %v421 = vpop.f32.mrf.mxu0
        %v422 = vadd.f32 %v395, %v421
        %423 = vdwg.mxu0
        %424 = vmatpush.msra.mxu0 0.0
        %425 = vmatpush.msra.mxu0 0.0
        %426 = vmatpush.msra.mxu0 0.0
        %427 = vmatpush.msra.mxu0 0.0
        %428 = vmatpush.msra.mxu0 0.0
        %429 = vmatpush.msra.mxu0 0.0
        %430 = vmatpush.msra.mxu0 0.0
        %431 = vmatpush.msra.mxu0 0.0
        %432 = vmatpush.msra.mxu0 0.0
        %433 = vmatpush.msra.mxu0 0.0
        %434 = vmatpush.msra.mxu0 0.0
        %435 = vmatpush.msra.mxu0 0.0
        %v436 = vand.u32 %v292, 4294901760
        %v437 = vsub.f32 %v292, %v436
        %v438 = vand.u32 %v437, 4294901760
        %439 = vmatpush.msra.mxu0 %v438
        %v440 = vand.u32 %v291, 4294901760
        %v441 = vsub.f32 %v291, %v440
        %v442 = vand.u32 %v441, 4294901760
        %443 = vmatpush.msra.mxu0 %v442
        %v444 = vand.u32 %v290, 4294901760
        %v445 = vsub.f32 %v290, %v444
        %v446 = vand.u32 %v445, 4294901760
        %447 = vmatpush.msra.mxu0 %v446
        %v448 = vand.u32 %v289, 4294901760
        %v449 = vsub.f32 %v289, %v448
        %v450 = vand.u32 %v449, 4294901760
        %451 = vmatpush.msra.mxu0 %v450
        %v452 = vand.u32 %v295, 4294901760
        %453 = vmatmul.f32.gmra.mxu0 %v452
        %v454 = vpop.f32.mrf.mxu0
        %v455 = vadd.f32 %v422, %v454
        %456 = vdwg.mxu0
        %457 = vmatpush.msra.mxu0 0.0
        %458 = vmatpush.msra.mxu0 0.0
        %459 = vmatpush.msra.mxu0 0.0
        %460 = vmatpush.msra.mxu0 0.0
        %461 = vmatpush.msra.mxu0 0.0
        %462 = vmatpush.msra.mxu0 0.0
        %463 = vmatpush.msra.mxu0 0.0
        %464 = vmatpush.msra.mxu0 0.0
        %465 = vmatpush.msra.mxu0 0.0
        %466 = vmatpush.msra.mxu0 0.0
        %467 = vmatpush.msra.mxu0 0.0
        %468 = vmatpush.msra.mxu0 0.0
        %v469 = vand.u32 %v292, 4294901760
        %470 = vmatpush.msra.mxu0 %v469
        %v471 = vand.u32 %v291, 4294901760
        %472 = vmatpush.msra.mxu0 %v471
        %v473 = vand.u32 %v290, 4294901760
        %474 = vmatpush.msra.mxu0 %v473
        %v475 = vand.u32 %v289, 4294901760
        %476 = vmatpush.msra.mxu0 %v475
        %v477 = vand.u32 %v295, 4294901760
        %478 = vmatmul.f32.gmra.mxu0 %v477
        %v479 = vpop.f32.mrf.mxu0
        %v480 = vadd.f32 %v455, %v479
        %481 = vdwg.mxu0
        %v482 = vld [vmem:[%s2] sm:$0xff]
        %v484 = vsel %vm293, %v482, 0
        %486 = vmatpush.msra.mxu0 0.0
        %487 = vmatpush.msra.mxu0 0.0
        %488 = vmatpush.msra.mxu0 0.0
        %489 = vmatpush.msra.mxu0 0.0
        %490 = vmatpush.msra.mxu0 0.0
        %491 = vmatpush.msra.mxu0 0.0
        %492 = vmatpush.msra.mxu0 0.0
        %493 = vmatpush.msra.mxu0 0.0
        %494 = vmatpush.msra.mxu0 0.0
        %495 = vmatpush.msra.mxu0 0.0
        %496 = vmatpush.msra.mxu0 0.0
        %497 = vmatpush.msra.mxu0 0.0
        %v498 = vand.u32 %v288, 4294901760
        %499 = vmatpush.msra.mxu0 %v498
        %v500 = vand.u32 %v287, 4294901760
        %501 = vmatpush.msra.mxu0 %v500
        %v502 = vand.u32 %v286, 4294901760
        %503 = vmatpush.msra.mxu0 %v502
        %v504 = vand.u32 %v285, 4294901760
        %505 = vmatpush.msra.mxu0 %v504
        %v506 = vand.u32 %v484, 4294901760
        %v507 = vsub.f32 %v484, %v506
        %v508 = vand.u32 %v507, 4294901760
        %v509 = vsub.f32 %v507, %v508
        %v510 = vand.u32 %v509, 4294901760
        %511 = vmatmul.f32.gmra.mxu0 %v510
        %v512 = vpop.f32.mrf.mxu0
        %v513 = vadd.f32 0.0, %v512
        %514 = vdwg.mxu0
        %515 = vmatpush.msra.mxu0 0.0
        %516 = vmatpush.msra.mxu0 0.0
        %517 = vmatpush.msra.mxu0 0.0
        %518 = vmatpush.msra.mxu0 0.0
        %519 = vmatpush.msra.mxu0 0.0
        %520 = vmatpush.msra.mxu0 0.0
        %521 = vmatpush.msra.mxu0 0.0
        %522 = vmatpush.msra.mxu0 0.0
        %523 = vmatpush.msra.mxu0 0.0
        %524 = vmatpush.msra.mxu0 0.0
        %525 = vmatpush.msra.mxu0 0.0
        %526 = vmatpush.msra.mxu0 0.0
        %v527 = vand.u32 %v288, 4294901760
        %v528 = vsub.f32 %v288, %v527
        %v529 = vand.u32 %v528, 4294901760
        %v530 = vsub.f32 %v528, %v529
        %v531 = vand.u32 %v530, 4294901760
        %532 = vmatpush.msra.mxu0 %v531
        %v533 = vand.u32 %v287, 4294901760
        %v534 = vsub.f32 %v287, %v533
        %v535 = vand.u32 %v534, 4294901760
        %v536 = vsub.f32 %v534, %v535
        %v537 = vand.u32 %v536, 4294901760
        %538 = vmatpush.msra.mxu0 %v537
        %v539 = vand.u32 %v286, 4294901760
        %v540 = vsub.f32 %v286, %v539
        %v541 = vand.u32 %v540, 4294901760
        %v542 = vsub.f32 %v540, %v541
        %v543 = vand.u32 %v542, 4294901760
        %544 = vmatpush.msra.mxu0 %v543
        %v545 = vand.u32 %v285, 4294901760
        %v546 = vsub.f32 %v285, %v545
        %v547 = vand.u32 %v546, 4294901760
        %v548 = vsub.f32 %v546, %v547
        %v549 = vand.u32 %v548, 4294901760
        %550 = vmatpush.msra.mxu0 %v549
        %v551 = vand.u32 %v484, 4294901760
        %552 = vmatmul.f32.gmra.mxu0 %v551
        %v553 = vpop.f32.mrf.mxu0
        %v554 = vadd.f32 %v513, %v553
        %555 = vdwg.mxu0
        %556 = vmatpush.msra.mxu0 0.0
        %557 = vmatpush.msra.mxu0 0.0
        %558 = vmatpush.msra.mxu0 0.0
        %559 = vmatpush.msra.mxu0 0.0
        %560 = vmatpush.msra.mxu0 0.0
        %561 = vmatpush.msra.mxu0 0.0
        %562 = vmatpush.msra.mxu0 0.0
        %563 = vmatpush.msra.mxu0 0.0
        %564 = vmatpush.msra.mxu0 0.0
        %565 = vmatpush.msra.mxu0 0.0
        %566 = vmatpush.msra.mxu0 0.0
        %567 = vmatpush.msra.mxu0 0.0
        %v568 = vand.u32 %v288, 4294901760
        %v569 = vsub.f32 %v288, %v568
        %570 = vmatpush.msra.mxu0 %v569
        %v571 = vand.u32 %v287, 4294901760
        %v572 = vsub.f32 %v287, %v571
        %573 = vmatpush.msra.mxu0 %v572
        %v574 = vand.u32 %v286, 4294901760
        %v575 = vsub.f32 %v286, %v574
        %576 = vmatpush.msra.mxu0 %v575
        %v577 = vand.u32 %v285, 4294901760
        %v578 = vsub.f32 %v285, %v577
        %579 = vmatpush.msra.mxu0 %v578
        %v580 = vand.u32 %v484, 4294901760
        %v581 = vsub.f32 %v484, %v580
        %582 = vmatmul.f32.gmra.mxu0 %v581
        %v583 = vpop.f32.mrf.mxu0
        %v584 = vadd.f32 %v554, %v583
        %585 = vdwg.mxu0
        %586 = vmatpush.msra.mxu0 0.0
        %587 = vmatpush.msra.mxu0 0.0
        %588 = vmatpush.msra.mxu0 0.0
        %589 = vmatpush.msra.mxu0 0.0
        %590 = vmatpush.msra.mxu0 0.0
        %591 = vmatpush.msra.mxu0 0.0
        %592 = vmatpush.msra.mxu0 0.0
        %593 = vmatpush.msra.mxu0 0.0
        %594 = vmatpush.msra.mxu0 0.0
        %595 = vmatpush.msra.mxu0 0.0
        %596 = vmatpush.msra.mxu0 0.0
        %597 = vmatpush.msra.mxu0 0.0
        %v598 = vand.u32 %v288, 4294901760
        %599 = vmatpush.msra.mxu0 %v598
        %v600 = vand.u32 %v287, 4294901760
        %601 = vmatpush.msra.mxu0 %v600
        %v602 = vand.u32 %v286, 4294901760
        %603 = vmatpush.msra.mxu0 %v602
        %v604 = vand.u32 %v285, 4294901760
        %605 = vmatpush.msra.mxu0 %v604
        %v606 = vand.u32 %v484, 4294901760
        %v607 = vsub.f32 %v484, %v606
        %v608 = vand.u32 %v607, 4294901760
        %609 = vmatmul.f32.gmra.mxu0 %v608
        %v610 = vpop.f32.mrf.mxu0
        %v611 = vadd.f32 %v584, %v610
        %612 = vdwg.mxu0
        %613 = vmatpush.msra.mxu0 0.0
        %614 = vmatpush.msra.mxu0 0.0
        %615 = vmatpush.msra.mxu0 0.0
        %616 = vmatpush.msra.mxu0 0.0
        %617 = vmatpush.msra.mxu0 0.0
        %618 = vmatpush.msra.mxu0 0.0
        %619 = vmatpush.msra.mxu0 0.0
        %620 = vmatpush.msra.mxu0 0.0
        %621 = vmatpush.msra.mxu0 0.0
        %622 = vmatpush.msra.mxu0 0.0
        %623 = vmatpush.msra.mxu0 0.0
        %624 = vmatpush.msra.mxu0 0.0
        %v625 = vand.u32 %v288, 4294901760
        %v626 = vsub.f32 %v288, %v625
        %v627 = vand.u32 %v626, 4294901760
        %628 = vmatpush.msra.mxu0 %v627
        %v629 = vand.u32 %v287, 4294901760
        %v630 = vsub.f32 %v287, %v629
        %v631 = vand.u32 %v630, 4294901760
        %632 = vmatpush.msra.mxu0 %v631
        %v633 = vand.u32 %v286, 4294901760
        %v634 = vsub.f32 %v286, %v633
        %v635 = vand.u32 %v634, 4294901760
        %636 = vmatpush.msra.mxu0 %v635
        %v637 = vand.u32 %v285, 4294901760
        %v638 = vsub.f32 %v285, %v637
        %v639 = vand.u32 %v638, 4294901760
        %640 = vmatpush.msra.mxu0 %v639
        %v641 = vand.u32 %v484, 4294901760
        %642 = vmatmul.f32.gmra.mxu0 %v641
        %v643 = vpop.f32.mrf.mxu0
        %v644 = vadd.f32 %v611, %v643
        %645 = vdwg.mxu0
        %646 = vmatpush.msra.mxu0 0.0
        %647 = vmatpush.msra.mxu0 0.0
        %648 = vmatpush.msra.mxu0 0.0
        %649 = vmatpush.msra.mxu0 0.0
        %650 = vmatpush.msra.mxu0 0.0
        %651 = vmatpush.msra.mxu0 0.0
        %652 = vmatpush.msra.mxu0 0.0
        %653 = vmatpush.msra.mxu0 0.0
        %654 = vmatpush.msra.mxu0 0.0
        %655 = vmatpush.msra.mxu0 0.0
        %656 = vmatpush.msra.mxu0 0.0
        %657 = vmatpush.msra.mxu0 0.0
        %v658 = vand.u32 %v288, 4294901760
        %659 = vmatpush.msra.mxu0 %v658
        %v660 = vand.u32 %v287, 4294901760
        %661 = vmatpush.msra.mxu0 %v660
        %v662 = vand.u32 %v286, 4294901760
        %663 = vmatpush.msra.mxu0 %v662
        %v664 = vand.u32 %v285, 4294901760
        %665 = vmatpush.msra.mxu0 %v664
        %v666 = vand.u32 %v484, 4294901760
        %667 = vmatmul.f32.gmra.mxu0 %v666
        %v668 = vpop.f32.mrf.mxu0
        %v669 = vadd.f32 %v644, %v668
        %670 = vdwg.mxu0
        %v671 = vld [vmem:[%s3] sm:$0xff]
        %673 = vset.pattern.permute.xlu0 0
        %674 = vperm.xlu0 %673, %v671
        %v675 = vpop.permute.xlu0 %674
        %v677 = vperm.slane %v480, 0
        %v678 = vmul.f32 %v675, %v677
        %v679 = vld [vmem:[%s4] sm:$0xff]
        %681 = vset.pattern.permute.xlu0 0
        %682 = vperm.xlu0 %681, %v679
        %v683 = vpop.permute.xlu0 %682
        %v685 = vadd.f32 %v678, %v683
        %v686 = vadd.f32 %v685, %v669
        %v687 = vrot.slane %v686, 4
        %v688 = vmax.f32 %v686, %v687
        %v689 = vrot.slane %v688, 2
        %v690 = vmax.f32 %v688, %v689
        %v691 = vrot.slane %v690, 1
        %v692 = vmax.f32 %v690, %v691
        %v693 = vsub.f32 %v686, %v692
        %v694 = vmul.f32 %v693, 1.442695
        %v695 = vpow.pop %v694
        %v696 = vrot.slane %v695, 4
        %v697 = vadd.f32 %v695, %v696
        %v698 = vrot.slane %v697, 2
        %v699 = vadd.f32 %v697, %v698
        %v700 = vrot.slane %v699, 1
        %v701 = vadd.f32 %v699, %v700
        %v702 = vrcp.pop %v701
        %v703 = vmul.f32 %v701, %v702
        %v704 = vsub.f32 1.0, %v703
        %v705 = vmul.f32 %v702, %v704
        %v706 = vadd.f32 %v702, %v705
        %vm707 = vweird.f32 %v701
        %vm708 = vweird.f32 %v702
        %vm709 = vmor %vm707, %vm708
        %v710 = vsel %vm709, %v702, %v706
        %v711 = vand.u32 2147483647, %v701
        %vm712 = vcmp.eq.f32.partialorder %v711, 8.507059e+37
        %v713 = vand.u32 %v701, 2147483648
        %v714 = vor.u32 1.1754944e-38, %v713
        %v715 = vsel %vm712, %v714, %v710
        %v716 = vmul.f32 1.0, %v715
        %v717 = vmul.f32 %v695, %v716
        %718 = vmatpush.xpose.msra.mxu0 0.0
        %719 = vmatpush.xpose.msra.mxu0 0.0
        %720 = vmatpush.xpose.msra.mxu0 0.0
        %721 = vmatpush.xpose.msra.mxu0 0.0
        %722 = vmatpush.xpose.msra.mxu0 0.0
        %723 = vmatpush.xpose.msra.mxu0 0.0
        %724 = vmatpush.xpose.msra.mxu0 0.0
        %725 = vmatpush.xpose.msra.mxu0 0.0
        %726 = vmatpush.xpose.msra.mxu0 0.0
        %727 = vmatpush.xpose.msra.mxu0 0.0
        %728 = vmatpush.xpose.msra.mxu0 0.0
        %729 = vmatpush.xpose.msra.mxu0 0.0
        %v730 = vand.u32 %v288, 4294901760
        %731 = vmatpush.xpose.msra.mxu0 %v730
        %v732 = vand.u32 %v287, 4294901760
        %733 = vmatpush.xpose.msra.mxu0 %v732
        %v734 = vand.u32 %v286, 4294901760
        %735 = vmatpush.xpose.msra.mxu0 %v734
        %v736 = vand.u32 %v285, 4294901760
        %737 = vmatpush.xpose.msra.mxu0 %v736
        %v738 = vand.u32 %v717, 4294901760
        %v739 = vsub.f32 %v717, %v738
        %v740 = vand.u32 %v739, 4294901760
        %v741 = vsub.f32 %v739, %v740
        %v742 = vand.u32 %v741, 4294901760
        %743 = vmatmul.f32.gmra.mxu0 %v742
        %v744 = vpop.f32.mrf.mxu0
        %v745 = vadd.f32 0.0, %v744
        %746 = vdwg.mxu0
        %747 = vmatpush.xpose.msra.mxu0 0.0
        %748 = vmatpush.xpose.msra.mxu0 0.0
        %749 = vmatpush.xpose.msra.mxu0 0.0
        %750 = vmatpush.xpose.msra.mxu0 0.0
        %751 = vmatpush.xpose.msra.mxu0 0.0
        %752 = vmatpush.xpose.msra.mxu0 0.0
        %753 = vmatpush.xpose.msra.mxu0 0.0
        %754 = vmatpush.xpose.msra.mxu0 0.0
        %755 = vmatpush.xpose.msra.mxu0 0.0
        %756 = vmatpush.xpose.msra.mxu0 0.0
        %757 = vmatpush.xpose.msra.mxu0 0.0
        %758 = vmatpush.xpose.msra.mxu0 0.0
        %v759 = vand.u32 %v288, 4294901760
        %v760 = vsub.f32 %v288, %v759
        %v761 = vand.u32 %v760, 4294901760
        %v762 = vsub.f32 %v760, %v761
        %v763 = vand.u32 %v762, 4294901760
        %764 = vmatpush.xpose.msra.mxu0 %v763
        %v765 = vand.u32 %v287, 4294901760
        %v766 = vsub.f32 %v287, %v765
        %v767 = vand.u32 %v766, 4294901760
        %v768 = vsub.f32 %v766, %v767
        %v769 = vand.u32 %v768, 4294901760
        %770 = vmatpush.xpose.msra.mxu0 %v769
        %v771 = vand.u32 %v286, 4294901760
        %v772 = vsub.f32 %v286, %v771
        %v773 = vand.u32 %v772, 4294901760
        %v774 = vsub.f32 %v772, %v773
        %v775 = vand.u32 %v774, 4294901760
        %776 = vmatpush.xpose.msra.mxu0 %v775
        %v777 = vand.u32 %v285, 4294901760
        %v778 = vsub.f32 %v285, %v777
        %v779 = vand.u32 %v778, 4294901760
        %v780 = vsub.f32 %v778, %v779
        %v781 = vand.u32 %v780, 4294901760
        %782 = vmatpush.xpose.msra.mxu0 %v781
        %v783 = vand.u32 %v717, 4294901760
        %784 = vmatmul.f32.gmra.mxu0 %v783
        %v785 = vpop.f32.mrf.mxu0
        %v786 = vadd.f32 %v745, %v785
        %787 = vdwg.mxu0
        %788 = vmatpush.xpose.msra.mxu0 0.0
        %789 = vmatpush.xpose.msra.mxu0 0.0
        %790 = vmatpush.xpose.msra.mxu0 0.0
        %791 = vmatpush.xpose.msra.mxu0 0.0
        %792 = vmatpush.xpose.msra.mxu0 0.0
        %793 = vmatpush.xpose.msra.mxu0 0.0
        %794 = vmatpush.xpose.msra.mxu0 0.0
        %795 = vmatpush.xpose.msra.mxu0 0.0
        %796 = vmatpush.xpose.msra.mxu0 0.0
        %797 = vmatpush.xpose.msra.mxu0 0.0
        %798 = vmatpush.xpose.msra.mxu0 0.0
        %799 = vmatpush.xpose.msra.mxu0 0.0
        %v800 = vand.u32 %v288, 4294901760
        %v801 = vsub.f32 %v288, %v800
        %802 = vmatpush.xpose.msra.mxu0 %v801
        %v803 = vand.u32 %v287, 4294901760
        %v804 = vsub.f32 %v287, %v803
        %805 = vmatpush.xpose.msra.mxu0 %v804
        %v806 = vand.u32 %v286, 4294901760
        %v807 = vsub.f32 %v286, %v806
        %808 = vmatpush.xpose.msra.mxu0 %v807
        %v809 = vand.u32 %v285, 4294901760
        %v810 = vsub.f32 %v285, %v809
        %811 = vmatpush.xpose.msra.mxu0 %v810
        %v812 = vand.u32 %v717, 4294901760
        %v813 = vsub.f32 %v717, %v812
        %814 = vmatmul.f32.gmra.mxu0 %v813
        %v815 = vpop.f32.mrf.mxu0
        %v816 = vadd.f32 %v786, %v815
        %817 = vdwg.mxu0
        %818 = vmatpush.xpose.msra.mxu0 0.0
        %819 = vmatpush.xpose.msra.mxu0 0.0
        %820 = vmatpush.xpose.msra.mxu0 0.0
        %821 = vmatpush.xpose.msra.mxu0 0.0
        %822 = vmatpush.xpose.msra.mxu0 0.0
        %823 = vmatpush.xpose.msra.mxu0 0.0
        %824 = vmatpush.xpose.msra.mxu0 0.0
        %825 = vmatpush.xpose.msra.mxu0 0.0
        %826 = vmatpush.xpose.msra.mxu0 0.0
        %827 = vmatpush.xpose.msra.mxu0 0.0
        %828 = vmatpush.xpose.msra.mxu0 0.0
        %829 = vmatpush.xpose.msra.mxu0 0.0
        %v830 = vand.u32 %v288, 4294901760
        %831 = vmatpush.xpose.msra.mxu0 %v830
        %v832 = vand.u32 %v287, 4294901760
        %833 = vmatpush.xpose.msra.mxu0 %v832
        %v834 = vand.u32 %v286, 4294901760
        %835 = vmatpush.xpose.msra.mxu0 %v834
        %v836 = vand.u32 %v285, 4294901760
        %837 = vmatpush.xpose.msra.mxu0 %v836
        %v838 = vand.u32 %v717, 4294901760
        %v839 = vsub.f32 %v717, %v838
        %v840 = vand.u32 %v839, 4294901760
        %841 = vmatmul.f32.gmra.mxu0 %v840
        %v842 = vpop.f32.mrf.mxu0
        %v843 = vadd.f32 %v816, %v842
        %844 = vdwg.mxu0
        %845 = vmatpush.xpose.msra.mxu0 0.0
        %846 = vmatpush.xpose.msra.mxu0 0.0
        %847 = vmatpush.xpose.msra.mxu0 0.0
        %848 = vmatpush.xpose.msra.mxu0 0.0
        %849 = vmatpush.xpose.msra.mxu0 0.0
        %850 = vmatpush.xpose.msra.mxu0 0.0
        %851 = vmatpush.xpose.msra.mxu0 0.0
        %852 = vmatpush.xpose.msra.mxu0 0.0
        %853 = vmatpush.xpose.msra.mxu0 0.0
        %854 = vmatpush.xpose.msra.mxu0 0.0
        %855 = vmatpush.xpose.msra.mxu0 0.0
        %856 = vmatpush.xpose.msra.mxu0 0.0
        %v857 = vand.u32 %v288, 4294901760
        %v858 = vsub.f32 %v288, %v857
        %v859 = vand.u32 %v858, 4294901760
        %860 = vmatpush.xpose.msra.mxu0 %v859
        %v861 = vand.u32 %v287, 4294901760
        %v862 = vsub.f32 %v287, %v861
        %v863 = vand.u32 %v862, 4294901760
        %864 = vmatpush.xpose.msra.mxu0 %v863
        %v865 = vand.u32 %v286, 4294901760
        %v866 = vsub.f32 %v286, %v865
        %v867 = vand.u32 %v866, 4294901760
        %868 = vmatpush.xpose.msra.mxu0 %v867
        %v869 = vand.u32 %v285, 4294901760
        %v870 = vsub.f32 %v285, %v869
        %v871 = vand.u32 %v870, 4294901760
        %872 = vmatpush.xpose.msra.mxu0 %v871
        %v873 = vand.u32 %v717, 4294901760
        %874 = vmatmul.f32.gmra.mxu0 %v873
        %v875 = vpop.f32.mrf.mxu0
        %v876 = vadd.f32 %v843, %v875
        %877 = vdwg.mxu0
        %878 = vmatpush.xpose.msra.mxu0 0.0
        %879 = vmatpush.xpose.msra.mxu0 0.0
        %880 = vmatpush.xpose.msra.mxu0 0.0
        %881 = vmatpush.xpose.msra.mxu0 0.0
        %882 = vmatpush.xpose.msra.mxu0 0.0
        %883 = vmatpush.xpose.msra.mxu0 0.0
        %884 = vmatpush.xpose.msra.mxu0 0.0
        %885 = vmatpush.xpose.msra.mxu0 0.0
        %886 = vmatpush.xpose.msra.mxu0 0.0
        %887 = vmatpush.xpose.msra.mxu0 0.0
        %888 = vmatpush.xpose.msra.mxu0 0.0
        %889 = vmatpush.xpose.msra.mxu0 0.0
        %v890 = vand.u32 %v288, 4294901760
        %891 = vmatpush.xpose.msra.mxu0 %v890
        %v892 = vand.u32 %v287, 4294901760
        %893 = vmatpush.xpose.msra.mxu0 %v892
        %v894 = vand.u32 %v286, 4294901760
        %895 = vmatpush.xpose.msra.mxu0 %v894
        %v896 = vand.u32 %v285, 4294901760
        %897 = vmatpush.xpose.msra.mxu0 %v896
        %v898 = vand.u32 %v717, 4294901760
        %899 = vmatmul.f32.gmra.mxu0 %v898
        %v900 = vpop.f32.mrf.mxu0
        %v901 = vadd.f32 %v876, %v900
        %902 = vdwg.mxu0
        %v903 = vld [vmem:[#allocation2] sm:$0xff]
        %v904 = vadd.f32 %v903, %v901
        %905 = vst.msk [vmem:[#allocation2] sm:$0xff] %vm293, %v904
        %v906 = vld [vmem:[#allocation3] sm:$0xff]
        %907 = vadd.xlane.f32.xlu0 %v717
        %v908 = vpop.xlane.xlu0 %907
        %v909 = vadd.f32 %v906, %v908
        %vm910 = vcmask 7168
        %911 = vst.msk [vmem:[#allocation3] sm:$0xff] %vm910, %v909
        %p912 = scmp.eq.s32.totalorder %s29, 1
        // Predicated region
        $region49: #{tpu_custom_call.1} parent=39 // pred_check
          %p913 = pneg %p912
        $region50: #{tpu_custom_call.1} parent=39 // pred_check_branch
          %915 = sbr.rel (%p913) target = $region52
        $region51: #{tpu_custom_call.1} parent=39 // pred_region
          %v916 = vld [vmem:[#allocation2] sm:$0xff]
          %v917 = vld [vmem:[#allocation3] sm:$0xff]
          %v918 = vld [vmem:[%s1] sm:$0xff]
          %920 = vset.pattern.permute.xlu0 0
          %921 = vperm.xlu0 %920, %v917
          %v922 = vpop.permute.xlu0 %921
          %v924 = vmul.f32 %v922, %v918
          %v925 = vsub.f32 %v916, %v924
          %926 = vst.msk [vmem:[%s274] sm:$0xff] %vm293, %v925
        $region52: #{tpu_custom_call.1} parent=39 // pred_fallthru
          _
        %s927 = sand.u32 %s167, 1
        %s928 = scalar_lea.sflag [#allocation6], %s927
        %s929 = sand.u32 %s167, 1
        %s930 = smul.addr %s929, 8
        %s931 = scalar_lea.vmem [#allocation7], %s930
        // Predicated region
        $region53: #{tpu_custom_call.1} parent=39 // pred_check
          %p932 = pneg %p177
        $region54: #{tpu_custom_call.1} parent=39 // pred_check_branch
          %934 = sbr.rel (%p932) target = $region56
        $region55: #{tpu_custom_call.1} parent=39 // pred_region
          %936 = vsyncadd %s928, 0
          %s937 = sadd.s32 %s28, %s27
          %s938 = smul.addr %s937, 8
          %s939 = scalar_lea.hbm %s5, %s938
          %s941 = sshll.u32 %s931, 4
          %s942 = int_to_ptr.vmem [resolvable:$true] %s941
          %s943 = sshll.u32 %s939, 4
          %s944 = int_to_ptr.hbm [resolvable:$true] %s943
          %946 = dma.vmem_to_hbm [thread:$0]  %s942, 128, %s944, %s928
        $region56: #{tpu_custom_call.1} parent=39 // pred_fallthru
          _
      $region40: #{tpu_custom_call.1} parent=5 // pred_fallthru
        _
      %p947 = scmp.le.s32.totalorder 2, %s17
      // Predicated region
      $region57: #{tpu_custom_call.1} parent=5 // pred_check
        %p948 = pneg %p947
      $region58: #{tpu_custom_call.1} parent=5 // pred_check_branch
        %950 = sbr.rel (%p948) target = $region60
      $region59: #{tpu_custom_call.1} parent=5 // pred_region
        %s951 = ssub.s32 %s17, 2
        // Predicated region
        $region61: #{tpu_custom_call.1} parent=59 // pred_check
          %p952 = pneg %p183
        $region62: #{tpu_custom_call.1} parent=59 // pred_check_branch
          %954 = sbr.rel (%p952) target = $region64
        $region63: #{tpu_custom_call.1} parent=59 // pred_region
          %s955 = sand.u32 %s168, 1
          %s956 = scalar_lea.sflag [#allocation6], %s955
          %s957 = sand.u32 %s168, 1
          %s958 = smul.addr %s957, 8
          %s959 = scalar_lea.vmem [#allocation7], %s958
          %961 = dma.done %s956, 128
        $region64: #{tpu_custom_call.1} parent=59 // pred_fallthru
          _
      $region60: #{tpu_custom_call.1} parent=5 // pred_fallthru
        _
    $region6: #{tpu_custom_call.1} parent=1 // loop_footer
      %s21 = sadd.s32 1, %s17
    $region7: #{tpu_custom_call.1} parent=1 // loop_footer_branch
      %16 = sbr.rel target = $region3
    $region8: #{tpu_custom_call.1} parent=1 // loop_exit
      _
    %962 = vsyncpa [#allocation5], 1
    %s963 = scalar_lea.sflag [#allocation5], 1
    %964 = vsyncpa %s963, 1
    %965 = vsyncpa [#allocation6], 1
    %s966 = scalar_lea.sflag [#allocation6], 1
    %967 = vsyncpa %s966, 1

</llo_original>
